<compile_context>
chip_gen: v6e
topology: v6e:2x2x1
jax: 0.10.0
libtpu: 0.0.40
codegen_flags: <defaults>
</compile_context>

<pallas_src>
import math
from functools import partial

import jax
import jax.numpy as jnp
from jax import lax
from jax.experimental import pallas as pl
from jax.experimental.pallas import tpu as pltpu


def mha_kernel(x_ref, wqkv_ref, wo_ref, bias_ref, o_ref, acc_ref, *, head_dim):
    """One (batch element, head) pair per grid step.

    x_ref:    (1, S, D)     bf16 VMEM  activations for this batch element
    wqkv_ref: (1, D, 3*dh)  bf16 VMEM  this head's fused, pre-transposed [Wq|Wk|Wv]
    wo_ref:   (1, dh, D)    bf16 VMEM  this head's slice of Wo^T
    bias_ref: (S, S)        f32  VMEM  additive mask bias (0 or -1e30)
    o_ref:    (1, S, D)     f32  VMEM  output block (resident across head axis)
    acc_ref:  (S, D)        f32  VMEM  output-projection accumulator scratch
    """
    dh = head_dim
    h = pl.program_id(1)

    @pl.when(h == 0)
    def _():
        acc_ref[...] = jnp.zeros_like(acc_ref)

    # Fused per-head QKV projection: bf16 operands -> f32 accumulation on the MXU.
    x = x_ref[0]                                                        # (S, D) bf16
    qkv = jnp.dot(x, wqkv_ref[0], preferred_element_type=jnp.float32)   # (S, 3*dh) f32

    scale = jnp.float32(1.0 / math.sqrt(dh))
    q = (qkv[:, 0 * dh:1 * dh] * scale).astype(jnp.bfloat16)            # scale folded into q
    k = qkv[:, 1 * dh:2 * dh].astype(jnp.bfloat16)
    v = qkv[:, 2 * dh:3 * dh].astype(jnp.bfloat16)

    # score = q @ k^T (contract on dh) without materializing a transposed copy of k.
    score = lax.dot_general(q, k, (((1,), (1,)), ((), ())),
                            preferred_element_type=jnp.float32)         # (S, S) f32
    score = score + bias_ref[...]

    # Numerically stable softmax; all elementwise math stays in f32 (VPU/EUP).
    # The reciprocal goes to the EUP slot instead of a VALU divide.
    m = jnp.max(score, axis=-1, keepdims=True)
    e = jnp.exp(score - m)
    denom = jnp.sum(e, axis=-1, keepdims=True)
    p = (e * pl.reciprocal(denom, approx=True)).astype(jnp.bfloat16)

    ctx = jnp.dot(p, v, preferred_element_type=jnp.float32)             # (S, dh) f32

    # Output projection decomposed over heads:
    #   concat_h(ctx_h) @ Wo^T == sum_h ctx_h @ Wo^T[h*dh:(h+1)*dh, :]
    acc_ref[...] += jnp.dot(ctx.astype(jnp.bfloat16), wo_ref[0],
                            preferred_element_type=jnp.float32)         # (S, D) f32

    @pl.when(h == pl.num_programs(1) - 1)
    def _():
        o_ref[0] = acc_ref[...].astype(o_ref.dtype)


def prepare_mha_params(wq, wk, wv, wo):
    """One-time weight re-layout (hoisted out of the per-call path).

    wq/wk/wv: (H, dh, D) nn.Linear weights; wo: (D, H*dh) nn.Linear weight.
    Returns bf16 MXU operands:
      wqkv:     (H, D, 3*dh)  per-head fused, pre-transposed [Wq|Wk|Wv]
      wo_heads: (H, dh, D)    per-head slices of Wo^T
    """
    H, dh, D = wq.shape
    wqkv = jnp.concatenate(
        [jnp.swapaxes(wq, 1, 2), jnp.swapaxes(wk, 1, 2), jnp.swapaxes(wv, 1, 2)],
        axis=-1).astype(jnp.bfloat16)                                   # (H, D, 3*dh)
    wo_heads = wo.T.reshape(H, dh, D).astype(jnp.bfloat16)              # (H, dh, D)
    return wqkv, wo_heads


def _padded_tile_bytes(shape, dtype):
    """Bytes of one VMEM buffer for `shape` with (sublane, lane) tile padding."""
    itemsize = jnp.dtype(dtype).itemsize
    sublane = 8 * (4 // itemsize)          # 8 rows/vreg for f32, 16 for bf16
    dims = list(shape)
    dims[-1] = pl.cdiv(dims[-1], 128) * 128
    if len(dims) > 1:
        dims[-2] = pl.cdiv(dims[-2], sublane) * sublane
    return math.prod(dims) * itemsize


@partial(jax.jit, static_argnames=("num_heads", "head_dim"))
def gpt2_multi_head_attention(x, wqkv, wo_heads, mask, *, num_heads, head_dim):
    """x: (B, S, D) f32; wqkv: (H, D, 3*dh) bf16; wo_heads: (H, dh, D) bf16; mask: (S, S)."""
    B, S, D = x.shape
    H, dh = num_heads, head_dim

    # Additive mask bias, computed once (no -inf NaN hazard for fully-masked
    # rows); kept f32 so the in-kernel softmax chain stays f32.
    bias = jnp.where(mask == 0, jnp.float32(-1e30), jnp.float32(0.0))   # (S, S)
    x_bf16 = x.astype(jnp.bfloat16)     # bf16 MXU operand; also halves the x DMA

    # Explicit VMEM budget from the padded tile footprint (double-buffered
    # inputs/outputs + scratch) with headroom for compiler temporaries.
    vmem_bytes = (
        2 * _padded_tile_bytes((1, S, D), jnp.bfloat16)                 # x block
        + 2 * _padded_tile_bytes((1, D, 3 * dh), jnp.bfloat16)          # wqkv block
        + 2 * _padded_tile_bytes((1, dh, D), jnp.bfloat16)              # wo block
        + 2 * _padded_tile_bytes((S, S), jnp.float32)                   # bias
        + 2 * _padded_tile_bytes((1, S, D), jnp.float32)                # output block
        + _padded_tile_bytes((S, D), jnp.float32)                       # acc scratch
    )
    vmem_limit = int(min(max(4 * vmem_bytes + (1 << 20), 4 << 20), 64 << 20))

    kernel = partial(mha_kernel, head_dim=dh)

    # grid = (batch, head): batch independent ("parallel", sharded across
    # TensorCores on megacore parts); head is the output-projection reduction
    # ("arbitrary"), over which the output block stays VMEM-resident.
    #
    # TODO(synk): at real GPT-2 shapes (S>=1024, D=768, dh=64) add a Q-sequence
    # tile axis with flash-style online softmax, pack 2 heads per MXU push so the
    # score / p@v matmuls are 128 lanes wide, single-buffer the grid-invariant
    # bias (pl.Buffered(1)) or generate the causal bias in-kernel from iota, and
    # for B=1 decode put the head/S-tile axis on a "parallel" grid dim so both
    # v7x TensorCores get work.
    return pl.pallas_call(
        kernel,
        out_shape=jax.ShapeDtypeStruct((B, S, D), jnp.float32),
        grid_spec=pltpu.PrefetchScalarGridSpec(
            num_scalar_prefetch=0,
            grid=(B, H),
            in_specs=[
                pl.BlockSpec((1, S, D), lambda b, h: (b, 0, 0)),         # x
                pl.BlockSpec((1, D, 3 * dh), lambda b, h: (h, 0, 0)),    # fused W_qkv^T (per head)
                pl.BlockSpec((1, dh, D), lambda b, h: (h, 0, 0)),        # Wo^T slice (per head)
                pl.BlockSpec((S, S), lambda b, h: (0, 0)),               # additive mask bias
            ],
            out_specs=pl.BlockSpec((1, S, D), lambda b, h: (b, 0, 0)),
            scratch_shapes=[pltpu.VMEM((S, D), jnp.float32)],
        ),
        compiler_params=pltpu.CompilerParams(
            dimension_semantics=("parallel", "arbitrary"),
            vmem_limit_bytes=vmem_limit),
    )(x_bf16, wqkv, wo_heads, bias)


def reference(x, wq, wk, wv, wo, mask, *, head_dim):
    """Pure-JAX f32 reference mirroring the PyTorch module."""
    q = jnp.einsum("bsd,hed->bhse", x, wq)
    k = jnp.einsum("bsd,hed->bhse", x, wk)
    v = jnp.einsum("bsd,hed->bhse", x, wv)
    score = jnp.einsum("bhqe,bhke->bhqk", q, k) / math.sqrt(head_dim)
    score = jnp.where(mask[None, None] == 0, -jnp.inf, score)
    p = jax.nn.softmax(score, axis=-1)
    o = jnp.einsum("bhqk,bhke->bhqe", p, v)                   # (B, H, S, dh)
    B, H, S, dh = o.shape
    concat = jnp.transpose(o, (0, 2, 1, 3)).reshape(B, S, H * dh)
    return concat @ wo.T


if __name__ == "__main__":
    # GPT2Configuration: decoder_dimension=32, head_dimension=8, number_of_heads=4
    B, S, D = 2, 8, 32
    H, dh = 4, 8

    key = jax.random.PRNGKey(0)
    kx, kq, kk, kv, ko = jax.random.split(key, 5)

    x = jax.random.normal(kx, (B, S, D), dtype=jnp.float32)
    # nn.Linear(D, dh, bias=False) weight shape: (dh, D); one per head -> (H, dh, D)
    wq = jax.random.normal(kq, (H, dh, D), dtype=jnp.float32) * 0.1
    wk = jax.random.normal(kk, (H, dh, D), dtype=jnp.float32) * 0.1
    wv = jax.random.normal(kv, (H, dh, D), dtype=jnp.float32) * 0.1
    # output projection: nn.Linear(H*dh, D, bias=False) weight shape (D, H*dh)
    wo = jax.random.normal(ko, (D, H * dh), dtype=jnp.float32) * 0.1
    # causal mask (S, S): 1 where attention allowed, 0 where masked
    mask = jnp.tril(jnp.ones((S, S), dtype=jnp.float32))

    # One-time weight re-layout (hoisted out of the per-call path).
    wqkv, wo_heads = prepare_mha_params(wq, wk, wv, wo)

    out = gpt2_multi_head_attention(x, wqkv, wo_heads, mask,
                                    num_heads=H, head_dim=dh)
    out = jax.block_until_ready(out)

    ref = reference(x, wq, wk, wv, wo, mask, head_dim=dh)
    assert out.shape == (B, S, D)
    # tolerance accounts for bf16 MXU operands + approx (EUP) softmax reciprocal
    err = float(jnp.max(jnp.abs(out - ref)))
    assert jnp.allclose(out, ref, atol=5e-2, rtol=5e-2), f"mismatch vs reference, max abs err {err:.4f}"

    print("KERNEL_OK")
</pallas_src>

<mosaic_0001>
module attributes {stable_mosaic.version = 11 : i64} {
  func.func @mha_kernel(%arg0: i32, %arg1: i32, %arg2: memref<1x8x32xbf16, #tpu.memory_space<vmem>>, %arg3: memref<1x32x24xbf16, #tpu.memory_space<vmem>>, %arg4: memref<1x8x32xbf16, #tpu.memory_space<vmem>>, %arg5: memref<8x8xf32, #tpu.memory_space<vmem>>, %arg6: memref<1x8x32xf32, #tpu.memory_space<vmem>>, %arg7: memref<8x32xf32, #tpu.memory_space<vmem>>) attributes {dimension_semantics = [#tpu.dimension_semantics<parallel>, #tpu.dimension_semantics<arbitrary>], iteration_bounds = array<i64: 2, 4>, scalar_prefetch = 0 : i64, scratch_operands = 1 : i64, tpu.core_type = #tpu.core_type<tc>, window_params = [{transform_indices = @transform_0, window_bounds = array<i64: 1, 8, 32>}, {transform_indices = @transform_1, window_bounds = array<i64: 1, 32, 24>}, {transform_indices = @transform_2, window_bounds = array<i64: 1, 8, 32>}, {pipeline_mode = #tpu.pipeline_mode<synchronous>, transform_indices = @transform_3, window_bounds = array<i64: 8, 8>}, {transform_indices = @transform_4, window_bounds = array<i64: 1, 8, 32>}]} {
    %c0_i32 = arith.constant 0 : i32
    %0 = arith.cmpi eq, %arg1, %c0_i32 : i32
    %1 = arith.extui %0 : i1 to i32
    %c0_i32_0 = arith.constant 0 : i32
    %2 = arith.cmpi ne, %1, %c0_i32_0 : i32
    scf.if %2 {
      %cst_22 = arith.constant 0.000000e+00 : f32
      %41 = vector.broadcast %cst_22 : f32 to vector<8x32xf32>
      %c0_23 = arith.constant 0 : index
      %c0_24 = arith.constant 0 : index
      %42 = vector.load %arg7[%c0_23, %c0_24] : memref<8x32xf32, #tpu.memory_space<vmem>>, vector<8x32xf32>
      tpu.vector_store %arg7[%c0_23, %c0_24], %41 {strides = array<i32>} : memref<8x32xf32, #tpu.memory_space<vmem>>, vector<8x32xf32>,
    } else {
    }
    %c0 = arith.constant 0 : index
    %c0_1 = arith.constant 0 : index
    %c0_2 = arith.constant 0 : index
    %3 = vector.load %arg2[%c0, %c0_1, %c0_2] : memref<1x8x32xbf16, #tpu.memory_space<vmem>>, vector<1x8x32xbf16>
    %4 = vector.shape_cast %3 : vector<1x8x32xbf16> to vector<8x32xbf16>
    %c0_3 = arith.constant 0 : index
    %c0_4 = arith.constant 0 : index
    %c0_5 = arith.constant 0 : index
    %5 = vector.load %arg3[%c0_3, %c0_4, %c0_5] : memref<1x32x24xbf16, #tpu.memory_space<vmem>>, vector<1x32x24xbf16>
    %6 = vector.shape_cast %5 : vector<1x32x24xbf16> to vector<32x24xbf16>
    %cst = arith.constant dense<0.000000e+00> : vector<8x24xf32>
    %7 = tpu.matmul %4, %6, %cst {dimension_numbers = #tpu.dot_dimension_numbers<[1], [0], [0], [1], [0, 0, 1, 1], [], []>} : vector<8x32xbf16>, vector<32x24xbf16>, vector<8x24xf32> -> vector<8x24xf32>
    %8 = vector.extract_strided_slice %7 {offsets = [0, 0], sizes = [8, 8], strides = [1, 1]} : vector<8x24xf32> to vector<8x8xf32>
    %cst_6 = arith.constant 0.353553385 : f32
    %9 = vector.broadcast %cst_6 : f32 to vector<8x8xf32>
    %10 = arith.mulf %8, %9 : vector<8x8xf32>
    %11 = arith.truncf %10 : vector<8x8xf32> to vector<8x8xbf16>
    %12 = vector.extract_strided_slice %7 {offsets = [0, 8], sizes = [8, 8], strides = [1, 1]} : vector<8x24xf32> to vector<8x8xf32>
    %13 = arith.truncf %12 : vector<8x8xf32> to vector<8x8xbf16>
    %14 = vector.extract_strided_slice %7 {offsets = [0, 16], sizes = [8, 8], strides = [1, 1]} : vector<8x24xf32> to vector<8x8xf32>
    %15 = arith.truncf %14 : vector<8x8xf32> to vector<8x8xbf16>
    %cst_7 = arith.constant dense<0.000000e+00> : vector<8x8xf32>
    %16 = tpu.matmul %11, %13, %cst_7 {dimension_numbers = #tpu.dot_dimension_numbers<[1], [1], [0], [0], [0, 0, 1, 0], [], []>} : vector<8x8xbf16>, vector<8x8xbf16>, vector<8x8xf32> -> vector<8x8xf32>
    %c0_8 = arith.constant 0 : index
    %c0_9 = arith.constant 0 : index
    %17 = vector.load %arg5[%c0_8, %c0_9] : memref<8x8xf32, #tpu.memory_space<vmem>>, vector<8x8xf32>
    %18 = arith.addf %16, %17 : vector<8x8xf32>
    %cst_10 = arith.constant dense<0xFF800000> : vector<8xf32>
    %19 = vector.multi_reduction <maximumf>, %18, %cst_10 [1] : vector<8x8xf32> to vector<8xf32>
    %20 = vector.shape_cast %19 : vector<8xf32> to vector<8x1xf32>
    %21 = vector.broadcast %20 : vector<8x1xf32> to vector<8x8xf32>
    %22 = arith.subf %18, %21 : vector<8x8xf32>
    %23 = math.exp %22 : vector<8x8xf32>
    %cst_11 = arith.constant dense<0.000000e+00> : vector<8xf32>
    %24 = vector.multi_reduction <add>, %23, %cst_11 [1] : vector<8x8xf32> to vector<8xf32>
    %25 = vector.shape_cast %24 : vector<8xf32> to vector<8x1xf32>
    %26 = tpu.reciprocal %25 {approx = true} : vector<8x1xf32> -> vector<8x1xf32>
    %27 = vector.broadcast %26 : vector<8x1xf32> to vector<8x8xf32>
    %28 = arith.mulf %23, %27 : vector<8x8xf32>
    %29 = arith.truncf %28 : vector<8x8xf32> to vector<8x8xbf16>
    %cst_12 = arith.constant dense<0.000000e+00> : vector<8x8xf32>
    %30 = tpu.matmul %29, %15, %cst_12 {dimension_numbers = #tpu.dot_dimension_numbers<[1], [0], [0], [1], [0, 0, 1, 1], [], []>} : vector<8x8xbf16>, vector<8x8xbf16>, vector<8x8xf32> -> vector<8x8xf32>
    %c0_13 = arith.constant 0 : index
    %c0_14 = arith.constant 0 : index
    %31 = vector.load %arg7[%c0_13, %c0_14] : memref<8x32xf32, #tpu.memory_space<vmem>>, vector<8x32xf32>
    %32 = arith.truncf %30 : vector<8x8xf32> to vector<8x8xbf16>
    %c0_15 = arith.constant 0 : index
    %c0_16 = arith.constant 0 : index
    %c0_17 = arith.constant 0 : index
    %33 = vector.load %arg4[%c0_15, %c0_16, %c0_17] : memref<1x8x32xbf16, #tpu.memory_space<vmem>>, vector<1x8x32xbf16>
    %34 = vector.shape_cast %33 : vector<1x8x32xbf16> to vector<8x32xbf16>
    %cst_18 = arith.constant dense<0.000000e+00> : vector<8x32xf32>
    %35 = tpu.matmul %32, %34, %cst_18 {dimension_numbers = #tpu.dot_dimension_numbers<[1], [0], [0], [1], [0, 0, 1, 1], [], []>} : vector<8x8xbf16>, vector<8x32xbf16>, vector<8x32xf32> -> vector<8x32xf32>
    %36 = arith.addf %31, %35 : vector<8x32xf32>
    %c0_19 = arith.constant 0 : index
    %c0_20 = arith.constant 0 : index
    %37 = vector.load %arg7[%c0_19, %c0_20] : memref<8x32xf32, #tpu.memory_space<vmem>>, vector<8x32xf32>
    tpu.vector_store %arg7[%c0_19, %c0_20], %36 {strides = array<i32>} : memref<8x32xf32, #tpu.memory_space<vmem>>, vector<8x32xf32>,
    %c3_i32 = arith.constant 3 : i32
    %38 = arith.cmpi eq, %arg1, %c3_i32 : i32
    %39 = arith.extui %38 : i1 to i32
    %c0_i32_21 = arith.constant 0 : i32
    %40 = arith.cmpi ne, %39, %c0_i32_21 : i32
    scf.if %40 {
      %c0_22 = arith.constant 0 : index
      %c0_23 = arith.constant 0 : index
      %41 = vector.load %arg7[%c0_22, %c0_23] : memref<8x32xf32, #tpu.memory_space<vmem>>, vector<8x32xf32>
      %c0_24 = arith.constant 0 : index
      %c0_25 = arith.constant 0 : index
      %c0_26 = arith.constant 0 : index
      %42 = vector.load %arg6[%c0_24, %c0_25, %c0_26] : memref<1x8x32xf32, #tpu.memory_space<vmem>>, vector<1x8x32xf32>
      %43 = vector.shape_cast %42 : vector<1x8x32xf32> to vector<8x32xf32>
      %44 = vector.shape_cast %41 : vector<8x32xf32> to vector<1x8x32xf32>
      tpu.vector_store %arg6[%c0_24, %c0_25, %c0_26], %44 {strides = array<i32>} : memref<1x8x32xf32, #tpu.memory_space<vmem>>, vector<1x8x32xf32>,
    } else {
    }
    return
  }
  func.func @transform_0(%arg0: i32, %arg1: i32) -> (i32, i32, i32) {
    %c0_i32 = arith.constant 0 : i32
    %c0_i32_0 = arith.constant 0 : i32
    %c0_i32_1 = arith.constant 0 : i32
    return %arg0, %c0_i32, %c0_i32_0 : i32, i32, i32
  }
  func.func @transform_1(%arg0: i32, %arg1: i32) -> (i32, i32, i32) {
    %c0_i32 = arith.constant 0 : i32
    %c0_i32_0 = arith.constant 0 : i32
    %c0_i32_1 = arith.constant 0 : i32
    return %arg1, %c0_i32, %c0_i32_0 : i32, i32, i32
  }
  func.func @transform_2(%arg0: i32, %arg1: i32) -> (i32, i32, i32) {
    %c0_i32 = arith.constant 0 : i32
    %c0_i32_0 = arith.constant 0 : i32
    %c0_i32_1 = arith.constant 0 : i32
    return %arg1, %c0_i32, %c0_i32_0 : i32, i32, i32
  }
  func.func @transform_3(%arg0: i32, %arg1: i32) -> (i32, i32) {
    %c0_i32 = arith.constant 0 : i32
    %c0_i32_0 = arith.constant 0 : i32
    %c0_i32_1 = arith.constant 0 : i32
    return %c0_i32, %c0_i32_0 : i32, i32
  }
  func.func @transform_4(%arg0: i32, %arg1: i32) -> (i32, i32, i32) {
    %c0_i32 = arith.constant 0 : i32
    %c0_i32_0 = arith.constant 0 : i32
    %c0_i32_1 = arith.constant 0 : i32
    return %arg0, %c0_i32, %c0_i32_0 : i32, i32, i32
  }
}

</mosaic_0001>

<llo_original>
// kernel: gpt2_multi_head_attention.1
$region0: #{gpt2_multi_head_attention.1}
  #allocation0 [shape = 'u32[]', space=smem, size = 0x4, offset = 0x4, fixed_abs, tag = 'smem constant byte address 0x4 - core index']
  #allocation1 [shape = 'u32[144,128]{1,0:T(1,128)}', space=vmem, size = 0x12000, scoped, tag = 'internal scratch']
  #allocation2 [shape = 'f32[8,32]{1,0:T(8,128)}', space=vmem, size = 0x1000, scoped, tag = 'scratch operand']
  %s0 = inlined_call_operand.vmem [shape: bf16[2,8,32], index: 0, kind: input, shape index: {}]
  %s1 = inlined_call_operand.vmem [shape: bf16[4,32,24], index: 1, kind: input, shape index: {}]
  %s2 = inlined_call_operand.vmem [shape: bf16[4,8,32], index: 2, kind: input, shape index: {}]
  %s3 = inlined_call_operand.vmem [shape: f32[8,8], index: 3, kind: input, shape index: {}]
  %s4 = inlined_call_operand.hbm [shape: f32[2,8,32], index: 4, kind: output, shape index: {}]
  %s5 = sld [smem:[#allocation0]]
  $region57: #{gpt2_multi_head_attention.1} parent=0
    _
  %s7 = ssub.s32 1, %s5
  %s8 = scalar_select 0, %s7, %s5
  $region1: #{gpt2_multi_head_attention.1} parent=0
    #allocation3 [shape = 'u8[8192]{0}', space=vmem, size = 0x2000, scoped, tag = 'output window, operand 0']
    #allocation4 [shape = 's32[2]{0}', space=sflag, size = 0x8, scoped, tag = 'scoped memory for gpt2_multi_head_attention.1']
    %9 = vsyncpa [#allocation4], 0
    %s10 = scalar_lea.sflag [#allocation4], 1
    %11 = vsyncpa %s10, 0
    loop: start=0, step=1, limit=10
    $region2: #{gpt2_multi_head_attention.1} parent=1 // loop_pre_header
      _
    $region3: #{gpt2_multi_head_attention.1} parent=1 // loop_header
      %s13 = sphi 0, %s17
      %p14 = scmp.ge.s32.totalorder %s13, 10
      %s20 = sphi 0, %s32
      %s21 = sphi 0, %s28
      %s22 = sphi 0, %s20
      %s23 = sphi 0, %s21
      %s24 = sphi 0, %s22
      %s25 = sphi 0, %s23
      %s35 = sphi 0, %s37
      %s38 = sphi 0, %s35
      %s39 = sphi 0, %s38
      %s55 = sphi 0, %s39
      %s61 = sphi 0, %s63
      %s64 = sphi 0, %s61
      %s65 = sphi 0, %s64
      %s81 = sphi 0, %s65
      %s87 = sphi 0, %s89
      %s90 = sphi 0, %s87
      %s91 = sphi 0, %s90
      %s107 = sphi 0, %s91
      %s111 = sphi 0, %s111
      %s113 = sphi 0, %s111
      %s114 = sphi 0, %s113
      %s128 = sphi 0, %s114
      %s134 = sphi 0, %s136
      %s137 = sphi 0, %s134
      %s138 = sphi 0, %s137
      %s154 = sphi 0, %s138
    $region4: #{gpt2_multi_head_attention.1} parent=1 // loop_header_branch
      %16 = sbr.rel (%p14) target = $region8
    $region5: #{gpt2_multi_head_attention.1} parent=1 // loop_body
      %s18 = ssub.s32 %s13, 1
      %s19 = ssub.s32 %s13, 2
      %s26 = sadd.s32 1, %s21
      %p27 = scmp.ge.s32.totalorder %s26, 4
      %s28 = scalar_select %p27, 0, %s26
      %s29 = sadd.s32 1, %s20
      %s30 = scalar_select %p27, %s29, %s20
      %p31 = scmp.ge.s32.totalorder %s30, 2
      %s32 = scalar_select %p31, 0, %s30
      %s33 = ssub.s32 %s20, %s32
      %p34 = scmp.eq.s32.totalorder %s33, 0
      %s36 = sadd.s32 %s35, 1
      %s37 = scalar_select %p34, %s35, %s36
      %p40 = pneg %p34
      %p41 = scmp.eq.s32.totalorder %s13, 7
      %p42 = por %p40, %p41
      %p43 = scmp.ne.s32.totalorder %s35, %s38
      %p44 = scmp.eq.s32.totalorder %s13, 0
      %p45 = por %p43, %p44
      %p46 = scmp.ne.s32.totalorder %s35, %s38
      %p47 = scmp.eq.s32.totalorder %s18, 7
      %p48 = por %p46, %p47
      %p49 = scmp.ne.s32.totalorder %s38, %s39
      %p50 = scmp.eq.s32.totalorder %s18, 0
      %p51 = por %p49, %p50
      %p52 = scmp.ne.s32.totalorder %s38, %s39
      %p53 = scmp.eq.s32.totalorder %s19, 7
      %p54 = por %p52, %p53
      %p56 = scmp.ne.s32.totalorder %s39, %s55
      %p57 = scmp.eq.s32.totalorder %s19, 0
      %p58 = por %p56, %p57
      %s59 = ssub.s32 %s21, %s28
      %p60 = scmp.eq.s32.totalorder %s59, 0
      %s62 = sadd.s32 %s61, 1
      %s63 = scalar_select %p60, %s61, %s62
      %p66 = pneg %p60
      %p67 = scmp.eq.s32.totalorder %s13, 7
      %p68 = por %p66, %p67
      %p69 = scmp.ne.s32.totalorder %s61, %s64
      %p70 = scmp.eq.s32.totalorder %s13, 0
      %p71 = por %p69, %p70
      %p72 = scmp.ne.s32.totalorder %s61, %s64
      %p73 = scmp.eq.s32.totalorder %s18, 7
      %p74 = por %p72, %p73
      %p75 = scmp.ne.s32.totalorder %s64, %s65
      %p76 = scmp.eq.s32.totalorder %s18, 0
      %p77 = por %p75, %p76
      %p78 = scmp.ne.s32.totalorder %s64, %s65
      %p79 = scmp.eq.s32.totalorder %s19, 7
      %p80 = por %p78, %p79
      %p82 = scmp.ne.s32.totalorder %s65, %s81
      %p83 = scmp.eq.s32.totalorder %s19, 0
      %p84 = por %p82, %p83
      %s85 = ssub.s32 %s21, %s28
      %p86 = scmp.eq.s32.totalorder %s85, 0
      %s88 = sadd.s32 %s87, 1
      %s89 = scalar_select %p86, %s87, %s88
      %p92 = pneg %p86
      %p93 = scmp.eq.s32.totalorder %s13, 7
      %p94 = por %p92, %p93
      %p95 = scmp.ne.s32.totalorder %s87, %s90
      %p96 = scmp.eq.s32.totalorder %s13, 0
      %p97 = por %p95, %p96
      %p98 = scmp.ne.s32.totalorder %s87, %s90
      %p99 = scmp.eq.s32.totalorder %s18, 7
      %p100 = por %p98, %p99
      %p101 = scmp.ne.s32.totalorder %s90, %s91
      %p102 = scmp.eq.s32.totalorder %s18, 0
      %p103 = por %p101, %p102
      %p104 = scmp.ne.s32.totalorder %s90, %s91
      %p105 = scmp.eq.s32.totalorder %s19, 7
      %p106 = por %p104, %p105
      %p108 = scmp.ne.s32.totalorder %s91, %s107
      %p109 = scmp.eq.s32.totalorder %s19, 0
      %p110 = por %p108, %p109
      %s112 = sadd.s32 %s111, 1
      %p115 = scmp.eq.s32.totalorder %s13, 7
      %p116 = scmp.ne.s32.totalorder %s111, %s113
      %p117 = scmp.eq.s32.totalorder %s13, 0
      %p118 = por %p116, %p117
      %p119 = scmp.ne.s32.totalorder %s111, %s113
      %p120 = scmp.eq.s32.totalorder %s18, 7
      %p121 = por %p119, %p120
      %p122 = scmp.ne.s32.totalorder %s113, %s114
      %p123 = scmp.eq.s32.totalorder %s18, 0
      %p124 = por %p122, %p123
      %p125 = scmp.ne.s32.totalorder %s113, %s114
      %p126 = scmp.eq.s32.totalorder %s19, 7
      %p127 = por %p125, %p126
      %p129 = scmp.ne.s32.totalorder %s114, %s128
      %p130 = scmp.eq.s32.totalorder %s19, 0
      %p131 = por %p129, %p130
      %s132 = ssub.s32 %s20, %s32
      %p133 = scmp.eq.s32.totalorder %s132, 0
      %s135 = sadd.s32 %s134, 1
      %s136 = scalar_select %p133, %s134, %s135
      %p139 = pneg %p133
      %p140 = scmp.eq.s32.totalorder %s13, 7
      %p141 = por %p139, %p140
      %p142 = scmp.ne.s32.totalorder %s134, %s137
      %p143 = scmp.eq.s32.totalorder %s13, 0
      %p144 = por %p142, %p143
      %p145 = scmp.ne.s32.totalorder %s134, %s137
      %p146 = scmp.eq.s32.totalorder %s18, 7
      %p147 = por %p145, %p146
      %p148 = scmp.ne.s32.totalorder %s137, %s138
      %p149 = scmp.eq.s32.totalorder %s18, 0
      %p150 = por %p148, %p149
      %p151 = scmp.ne.s32.totalorder %s137, %s138
      %p152 = scmp.eq.s32.totalorder %s19, 7
      %p153 = por %p151, %p152
      %p155 = scmp.ne.s32.totalorder %s138, %s154
      %p156 = scmp.eq.s32.totalorder %s19, 0
      %p157 = por %p155, %p156
      %p158 = scmp.le.s32.totalorder 1, %s13
      %p159 = scmp.lt.s32.totalorder %s13, 9
      %p160 = pnand %p158, %p159
      %p161 = pneg %p160
      // Predicated region
      $region9: #{gpt2_multi_head_attention.1} parent=5 // pred_check
        _
      $region10: #{gpt2_multi_head_attention.1} parent=5 // pred_check_branch
        %163 = sbr.rel (%p160) target = $region12
      $region11: #{gpt2_multi_head_attention.1} parent=5 // pred_region
        %s164 = ssub.s32 %s13, 1
        // Predicated region
        $region13: #{gpt2_multi_head_attention.1} parent=11 // pred_check
          %p165 = pneg %p124
        $region14: #{gpt2_multi_head_attention.1} parent=11 // pred_check_branch
          %167 = sbr.rel (%p165) target = $region16
        $region15: #{gpt2_multi_head_attention.1} parent=11 // pred_region
          _
        $region16: #{gpt2_multi_head_attention.1} parent=11 // pred_fallthru
          _
      $region12: #{gpt2_multi_head_attention.1} parent=5 // pred_fallthru
        _
      %p168 = scmp.lt.s32.totalorder %s13, 8
      // Predicated region
      $region17: #{gpt2_multi_head_attention.1} parent=5 // pred_check
        %p169 = pneg %p168
      $region18: #{gpt2_multi_head_attention.1} parent=5 // pred_check_branch
        %171 = sbr.rel (%p169) target = $region20
      $region19: #{gpt2_multi_head_attention.1} parent=5 // pred_region
        // Predicated region
        $region21: #{gpt2_multi_head_attention.1} parent=19 // pred_check
          %p172 = pneg %p45
        $region22: #{gpt2_multi_head_attention.1} parent=19 // pred_check_branch
          %174 = sbr.rel (%p172) target = $region24
        $region23: #{gpt2_multi_head_attention.1} parent=19 // pred_region
          %p175 = scmp.lt.s32.totalorder %s20, 1
          %s176 = scalar_select %p175, %s20, 1
          %s177 = smul.addr %s176, 4
          %s178 = scalar_lea.vmem %s0, %s177
        $region24: #{gpt2_multi_head_attention.1} parent=19 // pred_fallthru
          _
        // Predicated region
        $region25: #{gpt2_multi_head_attention.1} parent=19 // pred_check
          %p179 = pneg %p71
        $region26: #{gpt2_multi_head_attention.1} parent=19 // pred_check_branch
          %181 = sbr.rel (%p179) target = $region28
        $region27: #{gpt2_multi_head_attention.1} parent=19 // pred_region
          %p182 = scmp.lt.s32.totalorder %s21, 3
          %s183 = scalar_select %p182, %s21, 3
          %s184 = smul.addr %s183, 4
          %s185 = smul.addr %s184, 4
          %s186 = scalar_lea.vmem %s1, %s185
        $region28: #{gpt2_multi_head_attention.1} parent=19 // pred_fallthru
          _
        // Predicated region
        $region29: #{gpt2_multi_head_attention.1} parent=19 // pred_check
          %p187 = pneg %p97
        $region30: #{gpt2_multi_head_attention.1} parent=19 // pred_check_branch
          %189 = sbr.rel (%p187) target = $region32
        $region31: #{gpt2_multi_head_attention.1} parent=19 // pred_region
          %p190 = scmp.lt.s32.totalorder %s21, 3
          %s191 = scalar_select %p190, %s21, 3
          %s192 = smul.addr %s191, 4
          %s193 = scalar_lea.vmem %s2, %s192
        $region32: #{gpt2_multi_head_attention.1} parent=19 // pred_fallthru
          _
      $region20: #{gpt2_multi_head_attention.1} parent=5 // pred_fallthru
        _
      %p194 = scmp.le.s32.totalorder 1, %s13
      %p195 = scmp.lt.s32.totalorder %s13, 9
      %p196 = pnand %p194, %p195
      %p197 = pneg %p196
      // Predicated region
      $region33: #{gpt2_multi_head_attention.1} parent=5 // pred_check
        _
      $region34: #{gpt2_multi_head_attention.1} parent=5 // pred_check_branch
        %199 = sbr.rel (%p196) target = $region36
      $region35: #{gpt2_multi_head_attention.1} parent=5 // pred_region
        %s200 = ssub.s32 %s13, 1
        %p201 = scmp.lt.s32.totalorder %s22, 1
        %s202 = scalar_select %p201, %s22, 1
        %s203 = smul.addr %s202, 4
        %s204 = scalar_lea.vmem %s0, %s203
        %p205 = pneg %p51
        %p206 = pneg %p48
        %p207 = scmp.lt.s32.totalorder %s23, 3
        %s208 = scalar_select %p207, %s23, 3
        %s209 = smul.addr %s208, 4
        %s210 = smul.addr %s209, 4
        %s211 = scalar_lea.vmem %s1, %s210
        %p212 = pneg %p77
        %p213 = pneg %p74
        %p214 = scmp.lt.s32.totalorder %s23, 3
        %s215 = scalar_select %p214, %s23, 3
        %s216 = smul.addr %s215, 4
        %s217 = scalar_lea.vmem %s2, %s216
        %p218 = pneg %p103
        %p219 = pneg %p100
        %p220 = pneg %p124
        %p221 = pneg %p121
        %p222 = pneg %p150
        %p223 = pneg %p147
        %s224 = sand.u32 %s137, 1
        %s225 = scalar_lea.sflag [#allocation4], %s224
        %s226 = sand.u32 %s137, 1
        %s227 = smul.addr %s226, 8
        %s228 = scalar_lea.vmem [#allocation3], %s227
        %p229 = scmp.lt.s32.totalorder %s22, 1
        %s230 = scalar_select %p229, %s22, 1
        %s231 = smul.addr %s230, 4
        %s232 = scalar_lea.vmem %s0, %s231
        %p233 = scmp.lt.s32.totalorder %s23, 3
        %s234 = scalar_select %p233, %s23, 3
        %s235 = smul.addr %s234, 4
        %s236 = smul.addr %s235, 4
        %s237 = scalar_lea.vmem %s1, %s236
        %p238 = scmp.lt.s32.totalorder %s23, 3
        %s239 = scalar_select %p238, %s23, 3
        %s240 = smul.addr %s239, 4
        %s241 = scalar_lea.vmem %s2, %s240
        %p243 = scmp.eq.s32.totalorder %s23, 0
        // Predicated region
        $region37: #{gpt2_multi_head_attention.1} parent=35 // pred_check
          %p244 = pneg %p243
        $region38: #{gpt2_multi_head_attention.1} parent=35 // pred_check_branch
          %246 = sbr.rel (%p244) target = $region40
        $region39: #{gpt2_multi_head_attention.1} parent=35 // pred_region
          %vm247 = vcmask 261120
          %248 = vst.msk [vmem:[#allocation2] sm:$0xff] %vm247, 0.0
        $region40: #{gpt2_multi_head_attention.1} parent=35 // pred_fallthru
          _
        %v249 = vld [vmem:[%s232] sm:$0xf]
        %v250 = vld [vmem:[%s237] sm:$0xf]
        %v251 = vld [vmem:[%s237 + $0x4] sm:$0xf]
        %v252 = vld [vmem:[%s237 + $0x8] sm:$0xf]
        %v253 = vld [vmem:[%s237 + $0xc] sm:$0xf]
        %v258 = vunpack.c.l.b16 %v250
        %v259 = vunpack.c.l.b16 %v251
        %v260 = vunpack.c.l.b16 %v252
        %v261 = vunpack.c.l.b16 %v253
        %v262 = vpack.c.b16 %v259, %v258
        %v263 = vpack.c.b16 %v261, %v260
        %vm266 = vcmask 261120
        %v268 = vsel %vm266, %v249, 0
        %270 = vmatprep.subr.bf16.mxu0 0
        %271 = vmatpush1.bf16.msra.mxu0 0
        %272 = vmatprep.subr.bf16.mxu0 0
        %273 = vmatpush1.bf16.msra.mxu0 0
        %274 = vmatprep.subr.bf16.mxu0 0
        %275 = vmatpush1.bf16.msra.mxu0 0
        %276 = vmatprep.subr.bf16.mxu0 0
        %277 = vmatpush1.bf16.msra.mxu0 0
        %278 = vmatprep.subr.bf16.mxu0 0
        %279 = vmatpush1.bf16.msra.mxu0 0
        %280 = vmatprep.subr.bf16.mxu0 0
        %281 = vmatpush1.bf16.msra.mxu0 0
        %282 = vmatprep.subr.bf16.mxu0 0
        %283 = vmatpush1.bf16.msra.mxu0 %v263
        %284 = vmatprep.subr.bf16.mxu0 0
        %285 = vmatpush1.bf16.msra.mxu0 %v262
        %286 = vmatprep.subr.bf16.mxu0 0
        %287 = vmatpush2.bf16.msra.mxu0 0
        %288 = vmatprep.subr.bf16.mxu0 0
        %289 = vmatpush2.bf16.msra.mxu0 0
        %290 = vmatprep.subr.bf16.mxu0 0
        %291 = vmatpush2.bf16.msra.mxu0 0
        %292 = vmatprep.subr.bf16.mxu0 0
        %293 = vmatpush2.bf16.msra.mxu0 0
        %294 = vmatprep.subr.bf16.mxu0 0
        %295 = vmatpush2.bf16.msra.mxu0 0
        %296 = vmatprep.subr.bf16.mxu0 0
        %297 = vmatpush2.bf16.msra.mxu0 0
        %298 = vmatprep.subr.bf16.mxu0 0
        %299 = vmatpush2.bf16.msra.mxu0 0
        %300 = vmatprep.subr.bf16.mxu0 0
        %301 = vmatpush2.bf16.msra.mxu0 0
        %302 = vmatprep.mubr.bf16.mxu0 0
        %303 = vmatmul.mubr.bf16.gmra.mxu0 %v268
        %v304 = vpop.f32.mrf.mxu0
        %v305 = vadd.f32 0.0, %v304
        %v306 = vpop.f32.mrf.mxu0
        %v307 = vpop.f32.mrf.mxu0
        %v308 = vpop.f32.mrf.mxu0
        %309 = vdwg.mxu0
        %v310 = vmul.f32 %v305, 0.35355338
        %v311 = vpack.c.bf16 %v310, %v310
        %v312 = vpack.c.bf16 %v305, %v305
        %v313 = vld [vmem:[%s3] sm:$0xff]
        %315 = vrot.lane.b32.xlu0 %v312, 120
        %v316 = vpop.permute.xlu0 %315
        %vm317 = vcmask 64512
        %v319 = vsel %vm317, %v311, 0
        %v322 = vsel %vm317, %v316, 0
        %324 = vmatprep.subr.bf16.mxu0 0
        %325 = vmatpush1.bf16.xpose.msra.mxu0 0
        %326 = vmatprep.subr.bf16.mxu0 0
        %327 = vmatpush1.bf16.xpose.msra.mxu0 0
        %328 = vmatprep.subr.bf16.mxu0 0
        %329 = vmatpush1.bf16.xpose.msra.mxu0 0
        %330 = vmatprep.subr.bf16.mxu0 0
        %331 = vmatpush1.bf16.xpose.msra.mxu0 0
        %332 = vmatprep.subr.bf16.mxu0 0
        %333 = vmatpush1.bf16.xpose.msra.mxu0 0
        %334 = vmatprep.subr.bf16.mxu0 0
        %335 = vmatpush1.bf16.xpose.msra.mxu0 0
        %336 = vmatprep.subr.bf16.mxu0 0
        %337 = vmatpush1.bf16.xpose.msra.mxu0 0
        %338 = vmatprep.subr.bf16.mxu0 0
        %339 = vmatpush1.bf16.xpose.msra.mxu0 %v322
        %340 = vmatprep.subr.bf16.mxu0 0
        %341 = vmatpush2.bf16.xpose.msra.mxu0 0
        %342 = vmatprep.subr.bf16.mxu0 0
        %343 = vmatpush2.bf16.xpose.msra.mxu0 0
        %344 = vmatprep.subr.bf16.mxu0 0
        %345 = vmatpush2.bf16.xpose.msra.mxu0 0
        %346 = vmatprep.subr.bf16.mxu0 0
        %347 = vmatpush2.bf16.xpose.msra.mxu0 0
        %348 = vmatprep.subr.bf16.mxu0 0
        %349 = vmatpush2.bf16.xpose.msra.mxu0 0
        %350 = vmatprep.subr.bf16.mxu0 0
        %351 = vmatpush2.bf16.xpose.msra.mxu0 0
        %352 = vmatprep.subr.bf16.mxu0 0
        %353 = vmatpush2.bf16.xpose.msra.mxu0 0
        %354 = vmatprep.subr.bf16.mxu0 0
        %355 = vmatpush2.bf16.xpose.msra.mxu0 0
        %356 = vmatprep.mubr.bf16.mxu0 0
        %357 = vmatmul.mubr.bf16.gmra.mxu0 %v319
        %v358 = vpop.f32.mrf.mxu0
        %v359 = vadd.f32 %v313, %v358
        %v360 = vpop.f32.mrf.mxu0
        %v361 = vpop.f32.mrf.mxu0
        %v362 = vpop.f32.mrf.mxu0
        %363 = vdwg.mxu0
        %v364 = vsel %vm317, %v359, -inf
        %365 = vmax.xlane.f32.xlu0 %v364
        %v366 = vpop.xlane.xlu0 %365
        %v367 = vsub.f32 %v359, %v366
        %v368 = vmul.f32 %v367, 1.442695
        %v369 = vpow.pop %v368
        %v370 = vsel %vm317, %v369, 0.0
        %371 = vadd.xlane.f32.xlu0 %v370
        %v372 = vpop.xlane.xlu0 %371
        %v373 = vrcp.pop %v372
        %v374 = vmul.f32 %v369, %v373
        %v375 = vpack.c.bf16 %v374, %v374
        %376 = vrot.lane.b32.xlu0 %v312, 112
        %v377 = vpop.permute.xlu0 %376
        %v379 = vsel %vm317, %v375, 0
        %vm381 = vcmask 1043456
        %v383 = vsel %vm381, %v377, 0
        %385 = vmatprep.subr.bf16.mxu0 0
        %386 = vmatpush1.bf16.msra.mxu0 0
        %387 = vmatprep.subr.bf16.mxu0 0
        %388 = vmatpush1.bf16.msra.mxu0 0
        %389 = vmatprep.subr.bf16.mxu0 0
        %390 = vmatpush1.bf16.msra.mxu0 0
        %391 = vmatprep.subr.bf16.mxu0 0
        %392 = vmatpush1.bf16.msra.mxu0 0
        %393 = vmatprep.subr.bf16.mxu0 0
        %394 = vmatpush1.bf16.msra.mxu0 0
        %395 = vmatprep.subr.bf16.mxu0 0
        %396 = vmatpush1.bf16.msra.mxu0 0
        %397 = vmatprep.subr.bf16.mxu0 0
        %398 = vmatpush1.bf16.msra.mxu0 0
        %399 = vmatprep.subr.bf16.mxu0 0
        %400 = vmatpush1.bf16.msra.mxu0 %v383
        %401 = vmatprep.subr.bf16.mxu0 0
        %402 = vmatpush2.bf16.msra.mxu0 0
        %403 = vmatprep.subr.bf16.mxu0 0
        %404 = vmatpush2.bf16.msra.mxu0 0
        %405 = vmatprep.subr.bf16.mxu0 0
        %406 = vmatpush2.bf16.msra.mxu0 0
        %407 = vmatprep.subr.bf16.mxu0 0
        %408 = vmatpush2.bf16.msra.mxu0 0
        %409 = vmatprep.subr.bf16.mxu0 0
        %410 = vmatpush2.bf16.msra.mxu0 0
        %411 = vmatprep.subr.bf16.mxu0 0
        %412 = vmatpush2.bf16.msra.mxu0 0
        %413 = vmatprep.subr.bf16.mxu0 0
        %414 = vmatpush2.bf16.msra.mxu0 0
        %415 = vmatprep.subr.bf16.mxu0 0
        %416 = vmatpush2.bf16.msra.mxu0 0
        %417 = vmatprep.mubr.bf16.mxu0 0
        %418 = vmatmul.mubr.bf16.gmra.mxu0 %v379
        %v419 = vpop.f32.mrf.mxu0
        %v420 = vadd.f32 0.0, %v419
        %v421 = vpop.f32.mrf.mxu0
        %v422 = vpop.f32.mrf.mxu0
        %v423 = vpop.f32.mrf.mxu0
        %424 = vdwg.mxu0
        %v425 = vld [vmem:[#allocation2] sm:$0xff]
        %v426 = vpack.c.bf16 %v420, %v420
        %v427 = vld [vmem:[%s241] sm:$0xf]
        %v429 = vsel %vm317, %v426, 0
        %v432 = vsel %vm381, %v427, 0
        %434 = vmatprep.subr.bf16.mxu0 0
        %435 = vmatpush1.bf16.msra.mxu0 0
        %436 = vmatprep.subr.bf16.mxu0 0
        %437 = vmatpush1.bf16.msra.mxu0 0
        %438 = vmatprep.subr.bf16.mxu0 0
        %439 = vmatpush1.bf16.msra.mxu0 0
        %440 = vmatprep.subr.bf16.mxu0 0
        %441 = vmatpush1.bf16.msra.mxu0 0
        %442 = vmatprep.subr.bf16.mxu0 0
        %443 = vmatpush1.bf16.msra.mxu0 0
        %444 = vmatprep.subr.bf16.mxu0 0
        %445 = vmatpush1.bf16.msra.mxu0 0
        %446 = vmatprep.subr.bf16.mxu0 0
        %447 = vmatpush1.bf16.msra.mxu0 0
        %448 = vmatprep.subr.bf16.mxu0 0
        %449 = vmatpush1.bf16.msra.mxu0 %v432
        %450 = vmatprep.subr.bf16.mxu0 0
        %451 = vmatpush2.bf16.msra.mxu0 0
        %452 = vmatprep.subr.bf16.mxu0 0
        %453 = vmatpush2.bf16.msra.mxu0 0
        %454 = vmatprep.subr.bf16.mxu0 0
        %455 = vmatpush2.bf16.msra.mxu0 0
        %456 = vmatprep.subr.bf16.mxu0 0
        %457 = vmatpush2.bf16.msra.mxu0 0
        %458 = vmatprep.subr.bf16.mxu0 0
        %459 = vmatpush2.bf16.msra.mxu0 0
        %460 = vmatprep.subr.bf16.mxu0 0
        %461 = vmatpush2.bf16.msra.mxu0 0
        %462 = vmatprep.subr.bf16.mxu0 0
        %463 = vmatpush2.bf16.msra.mxu0 0
        %464 = vmatprep.subr.bf16.mxu0 0
        %465 = vmatpush2.bf16.msra.mxu0 0
        %466 = vmatprep.mubr.bf16.mxu0 0
        %467 = vmatmul.mubr.bf16.gmra.mxu0 %v429
        %v468 = vpop.f32.mrf.mxu0
        %v469 = vadd.f32 0.0, %v468
        %v470 = vpop.f32.mrf.mxu0
        %v471 = vpop.f32.mrf.mxu0
        %v472 = vpop.f32.mrf.mxu0
        %473 = vdwg.mxu0
        %v474 = vadd.f32 %v425, %v469
        %475 = vst.msk [vmem:[#allocation2] sm:$0xff] %vm266, %v474
        %p476 = scmp.eq.s32.totalorder %s23, 3
        // Predicated region
        $region41: #{gpt2_multi_head_attention.1} parent=35 // pred_check
          %p477 = pneg %p476
        $region42: #{gpt2_multi_head_attention.1} parent=35 // pred_check_branch
          %479 = sbr.rel (%p477) target = $region44
        $region43: #{gpt2_multi_head_attention.1} parent=35 // pred_region
          %v480 = vld [vmem:[#allocation2] sm:$0xff]
          %481 = vst.msk [vmem:[%s228] sm:$0xff] %vm266, %v480
        $region44: #{gpt2_multi_head_attention.1} parent=35 // pred_fallthru
          _
        %s482 = sand.u32 %s137, 1
        %s483 = scalar_lea.sflag [#allocation4], %s482
        %s484 = sand.u32 %s137, 1
        %s485 = smul.addr %s484, 8
        %s486 = scalar_lea.vmem [#allocation3], %s485
        // Predicated region
        $region45: #{gpt2_multi_head_attention.1} parent=35 // pred_check
          %p487 = pneg %p147
        $region46: #{gpt2_multi_head_attention.1} parent=35 // pred_check_branch
          %489 = sbr.rel (%p487) target = $region48
        $region47: #{gpt2_multi_head_attention.1} parent=35 // pred_region
          %s491 = ssub.s32 128, 128
          %492 = vsyncadd %s483, %s491
          %s493 = smul.addr %s22, 128
          %s494 = scalar_lea.hbm %s4, %s493
          %s496 = sshll.u32 %s486, 4
          %s497 = int_to_ptr.vmem [resolvable:$true] %s496
          %499 = dma.vmem_to_hbm [thread:$0]  %s497, 128, %s494, %s483
        $region48: #{gpt2_multi_head_attention.1} parent=35 // pred_fallthru
          _
      $region36: #{gpt2_multi_head_attention.1} parent=5 // pred_fallthru
        _
      %p500 = scmp.le.s32.totalorder 2, %s13
      // Predicated region
      $region49: #{gpt2_multi_head_attention.1} parent=5 // pred_check
        %p501 = pneg %p500
      $region50: #{gpt2_multi_head_attention.1} parent=5 // pred_check_branch
        %503 = sbr.rel (%p501) target = $region52
      $region51: #{gpt2_multi_head_attention.1} parent=5 // pred_region
        %s504 = ssub.s32 %s13, 2
        // Predicated region
        $region53: #{gpt2_multi_head_attention.1} parent=51 // pred_check
          %p505 = pneg %p153
        $region54: #{gpt2_multi_head_attention.1} parent=51 // pred_check_branch
          %507 = sbr.rel (%p505) target = $region56
        $region55: #{gpt2_multi_head_attention.1} parent=51 // pred_region
          %s508 = sand.u32 %s138, 1
          %s509 = scalar_lea.sflag [#allocation4], %s508
          %s510 = sand.u32 %s138, 1
          %s511 = smul.addr %s510, 8
          %s512 = scalar_lea.vmem [#allocation3], %s511
          %513 = dma.done %s509, 128
        $region56: #{gpt2_multi_head_attention.1} parent=51 // pred_fallthru
          _
      $region52: #{gpt2_multi_head_attention.1} parent=5 // pred_fallthru
        _
    $region6: #{gpt2_multi_head_attention.1} parent=1 // loop_footer
      %s17 = sadd.s32 1, %s13
    $region7: #{gpt2_multi_head_attention.1} parent=1 // loop_footer_branch
      %12 = sbr.rel target = $region3
    $region8: #{gpt2_multi_head_attention.1} parent=1 // loop_exit
      _
    %514 = vsyncpa [#allocation4], 1
    %s515 = scalar_lea.sflag [#allocation4], 1
    %516 = vsyncpa %s515, 1

</llo_original>
